<compile_context>
chip_gen: v6e
topology: v6e:2x2x1
jax: 0.10.0
libtpu: 0.0.40
codegen_flags: <defaults>
</compile_context>

<pallas_src>
import functools
import math

import jax
import jax.numpy as jnp
from jax.experimental import pallas as pl
from jax.experimental.pallas import tpu as pltpu

LANE = 128  # TPU lane width


def _round_up(v, m):
    return ((v + m - 1) // m) * m


def _swish(z):
    # swish(z) = z * sigmoid(z) = z / (1 + exp(-z)).
    # exp() runs on the EUP in z's dtype (bf16 on v6e/v7x -> ~2x EUP rate);
    # the reciprocal uses the approx EUP op in f32 (cheap, and avoids relying
    # on bf16 vrcp support). Result is f32.
    denom = (1.0 + jnp.exp(-z)).astype(jnp.float32)
    return z.astype(jnp.float32) * pl.reciprocal(denom, approx=True)


def two_layer_linear_kernel(x_ref, w1_ref, b1_ref, w2_ref, b2_ref, o_ref, *,
                            bf16_epilogue):
    # x_ref : (tm, C_in)          input rows (original dtype; cast in-kernel)
    # w1_ref: (C_in, C_mid_p)     bf16 weight, resident across the grid
    # b1_ref: (1, C_mid_p)        f32
    # w2_ref: (C_mid_p, C_out_p)  bf16
    # b2_ref: (1, C_out_p)        f32
    # o_ref : (tm, C_out_p)       lane-dense (128-multiple) output tile
    x = x_ref[...].astype(w1_ref.dtype)   # in-kernel cast: no extra HBM pass
    h = jnp.dot(x, w1_ref[...], preferred_element_type=jnp.float32) + b1_ref[...]
    if bf16_epilogue:
        h = h.astype(jnp.bfloat16)         # v6e/v7x: bf16 EUP/VPU for the swish
    h = _swish(h)                          # -> f32
    y = jnp.dot(h.astype(w2_ref.dtype), w2_ref[...],
                preferred_element_type=jnp.float32) + b2_ref[...]
    if bf16_epilogue:
        y = y.astype(jnp.bfloat16)
    y = _swish(y)                          # -> f32
    o_ref[...] = y.astype(o_ref.dtype)     # single cast on the (bf16) store


def prepare_params(w1, b1, w2, b2, *, compute_dtype=jnp.bfloat16):
    """Transpose, zero-pad feature dims to lane multiples, cast weights to bf16.

    Call once at parameter-load time (hoisted out of the per-call path).
    w1: (C_mid, C_in), b1: (C_mid,), w2: (C_out, C_mid), b2: (C_out,).
    """
    c_mid, c_in = w1.shape
    c_out = w2.shape[0]
    c_mid_p = _round_up(c_mid, LANE)
    c_out_p = _round_up(c_out, LANE)

    w1_t = jnp.zeros((c_in, c_mid_p), compute_dtype)
    w1_t = w1_t.at[:, :c_mid].set(w1.T.astype(compute_dtype))
    b1_r = jnp.zeros((1, c_mid_p), jnp.float32)
    b1_r = b1_r.at[:, :c_mid].set(b1.astype(jnp.float32)[None, :])
    # Padded hidden columns see zero weight + zero bias -> swish(0) = 0, so the
    # padded rows of w2 contribute nothing (they are zero anyway).
    w2_t = jnp.zeros((c_mid_p, c_out_p), compute_dtype)
    w2_t = w2_t.at[:c_mid, :c_out].set(w2.T.astype(compute_dtype))
    b2_r = jnp.zeros((1, c_out_p), jnp.float32)
    b2_r = b2_r.at[:, :c_out].set(b2.astype(jnp.float32)[None, :])
    return (w1_t, b1_r, w2_t, b2_r), c_out


def _bf16_epilogue_default():
    # v5e (and older) have no bf16 VPU/EUP; keep the f32 elementwise path there.
    try:
        kind = jax.devices()[0].device_kind.lower()
    except Exception:
        return False
    return not any(v in kind for v in ("v2", "v3", "v4", "v5"))


def two_layer_linear_apply(x, params, c_out, *, tm=None, out_dtype=jnp.bfloat16,
                           bf16_epilogue=None, single_buffer_weights=None,
                           unpad=True):
    """x: (N, C_in); params from prepare_params(). Returns (N, c_out) in out_dtype.

    Perf-critical callers should set unpad=False and consume the lane-padded
    (N, c_out_p) slab directly (saves an extra HBM pass for the column slice),
    and batch many row blocks into a single large N before calling.
    """
    w1_t, b1_r, w2_t, b2_r = params
    n, c_in = x.shape
    c_mid_p = w1_t.shape[1]
    c_out_p = w2_t.shape[1]

    if bf16_epilogue is None:
        bf16_epilogue = _bf16_epilogue_default()

    if tm is None:
        tm = 512  # large tile amortizes ~0.35 us/step and fills the MXU M dim
        if n <= tm:
            # Small-N: shrink so the grid keeps 2 steps (both v7x TCs get work).
            tm = max(16, _round_up(pl.cdiv(n, 2), 16))
        else:
            nt = pl.cdiv(n, tm)
            if nt % 2 == 1:
                # Even parallel-grid count so v7x's two TensorCores stay balanced.
                tm = max(16, _round_up(pl.cdiv(n, nt + 1), 16))

    # Single-buffer the grid-invariant operands only when double-buffering them
    # would meaningfully eat VMEM (v7x: 64 MiB physical / 32 MiB scoped default).
    if single_buffer_weights is None:
        w_bytes = (w1_t.size * w1_t.dtype.itemsize
                   + w2_t.size * w2_t.dtype.itemsize)
        single_buffer_weights = 2 * w_bytes > (8 << 20)

    def _const_spec(shape):
        idx = lambda i, _nd=len(shape): (0,) * _nd
        if single_buffer_weights:
            return pl.BlockSpec(shape, idx, pipeline_mode=pl.Buffered(1))
        return pl.BlockSpec(shape, idx)

    grid = (pl.cdiv(n, tm),)
    kernel = functools.partial(two_layer_linear_kernel,
                               bf16_epilogue=bf16_epilogue)
    out = pl.pallas_call(
        kernel,
        out_shape=jax.ShapeDtypeStruct((n, c_out_p), out_dtype),
        grid_spec=pltpu.PrefetchScalarGridSpec(
            num_scalar_prefetch=0,
            grid=grid,
            in_specs=[
                pl.BlockSpec((tm, c_in), lambda i: (i, 0)),
                _const_spec((c_in, c_mid_p)),
                _const_spec((1, c_mid_p)),
                _const_spec((c_mid_p, c_out_p)),
                _const_spec((1, c_out_p)),
            ],
            out_specs=pl.BlockSpec((tm, c_out_p), lambda i: (i, 0)),
        ),
        compiler_params=pltpu.CompilerParams(
            dimension_semantics=("parallel",)),
    )(x, w1_t, b1_r, w2_t, b2_r)

    if unpad and c_out != c_out_p:
        out = out[:, :c_out]
    return out


def two_layer_linear(x, w1, b1, w2, b2, *, tm=None, out_dtype=jnp.bfloat16,
                     compute_dtype=jnp.bfloat16):
    """Convenience wrapper: prep params + apply (prefer prepare_params once)."""
    params, c_out = prepare_params(w1, b1, w2, b2, compute_dtype=compute_dtype)
    return two_layer_linear_apply(x, params, c_out, tm=tm, out_dtype=out_dtype)


def glorot_uniform(key, out_c, in_c, dtype=jnp.float32):
    # Matches torch_geometric inits.glorot: U(-a, a), a = sqrt(6/(fan_in+fan_out))
    a = math.sqrt(6.0 / (in_c + out_c))
    return jax.random.uniform(key, (out_c, in_c), dtype=dtype, minval=-a, maxval=a)


def reference_f32(x, w1, b1, w2, b2):
    def swish(z):
        return z * jax.nn.sigmoid(z)
    h = swish(x @ w1.T + b1)
    return swish(h @ w2.T + b2)


if __name__ == "__main__":
    key = jax.random.PRNGKey(0)
    k_x, k_w1, k_w2 = jax.random.split(key, 3)

    N, C_IN, C_MID, C_OUT = 128, 32, 64, 16

    x = jax.random.normal(k_x, (N, C_IN), dtype=jnp.float32)
    w1 = glorot_uniform(k_w1, C_MID, C_IN)
    b1 = jnp.zeros((C_MID,), dtype=jnp.float32)      # bias_initializer='zeros'
    w2 = glorot_uniform(k_w2, C_OUT, C_MID)
    b2 = jnp.zeros((C_OUT,), dtype=jnp.float32)

    # Hoisted parameter prep (done once), then apply.
    params, c_out = prepare_params(w1, b1, w2, b2)
    out = two_layer_linear_apply(x, params, c_out)
    out = jax.block_until_ready(out)

    assert out.shape == (N, C_OUT)
    assert out.dtype == jnp.bfloat16

    # Check vs. full-f32 module semantics; tolerance covers bf16 inputs/weights,
    # bf16 output store and the approx-EUP reciprocal in the swish.
    ref = reference_f32(x, w1, b1, w2, b2)
    assert jnp.allclose(out.astype(jnp.float32), ref, atol=5e-2, rtol=5e-2), \
        "mismatch vs f32 reference"

    print("KERNEL_OK")
</pallas_src>

<mosaic_0001>
module attributes {stable_mosaic.version = 11 : i64} {
  func.func @two_layer_linear_kernel(%arg0: i32, %arg1: memref<64x32xf32, #tpu.memory_space<vmem>>, %arg2: memref<32x128xbf16, #tpu.memory_space<vmem>>, %arg3: memref<1x128xf32, #tpu.memory_space<vmem>>, %arg4: memref<128x128xbf16, #tpu.memory_space<vmem>>, %arg5: memref<1x128xf32, #tpu.memory_space<vmem>>, %arg6: memref<64x128xbf16, #tpu.memory_space<vmem>>) attributes {dimension_semantics = [#tpu.dimension_semantics<parallel>], iteration_bounds = array<i64: 2>, scalar_prefetch = 0 : i64, scratch_operands = 0 : i64, tpu.core_type = #tpu.core_type<tc>, window_params = [{transform_indices = @transform_0, window_bounds = array<i64: 64, 32>}, {pipeline_mode = #tpu.pipeline_mode<synchronous>, transform_indices = @transform_1, window_bounds = array<i64: 32, 128>}, {pipeline_mode = #tpu.pipeline_mode<synchronous>, transform_indices = @transform_2, window_bounds = array<i64: 1, 128>}, {pipeline_mode = #tpu.pipeline_mode<synchronous>, transform_indices = @transform_3, window_bounds = array<i64: 128, 128>}, {pipeline_mode = #tpu.pipeline_mode<synchronous>, transform_indices = @transform_4, window_bounds = array<i64: 1, 128>}, {transform_indices = @transform_5, window_bounds = array<i64: 64, 128>}]} {
    %c0 = arith.constant 0 : index
    %c0_0 = arith.constant 0 : index
    %0 = vector.load %arg1[%c0, %c0_0] : memref<64x32xf32, #tpu.memory_space<vmem>>, vector<64x32xf32>
    %1 = arith.truncf %0 : vector<64x32xf32> to vector<64x32xbf16>
    %c0_1 = arith.constant 0 : index
    %c0_2 = arith.constant 0 : index
    %2 = vector.load %arg2[%c0_1, %c0_2] : memref<32x128xbf16, #tpu.memory_space<vmem>>, vector<32x128xbf16>
    %cst = arith.constant dense<0.000000e+00> : vector<64x128xf32>
    %3 = tpu.matmul %1, %2, %cst {dimension_numbers = #tpu.dot_dimension_numbers<[1], [0], [0], [1], [0, 0, 1, 1], [], []>} : vector<64x32xbf16>, vector<32x128xbf16>, vector<64x128xf32> -> vector<64x128xf32>
    %c0_3 = arith.constant 0 : index
    %c0_4 = arith.constant 0 : index
    %4 = vector.load %arg3[%c0_3, %c0_4] : memref<1x128xf32, #tpu.memory_space<vmem>>, vector<1x128xf32>
    %5 = vector.broadcast %4 : vector<1x128xf32> to vector<64x128xf32>
    %6 = arith.addf %3, %5 : vector<64x128xf32>
    %7 = arith.truncf %6 : vector<64x128xf32> to vector<64x128xbf16>
    %cst_5 = arith.constant 0.000000e+00 : bf16
    %8 = vector.broadcast %cst_5 : bf16 to vector<64x128xbf16>
    %9 = arith.subf %8, %7 : vector<64x128xbf16>
    %10 = math.exp %9 : vector<64x128xbf16>
    %cst_6 = arith.constant 1.000000e+00 : bf16
    %11 = vector.broadcast %cst_6 : bf16 to vector<64x128xbf16>
    %12 = arith.addf %11, %10 : vector<64x128xbf16>
    %13 = arith.extf %12 : vector<64x128xbf16> to vector<64x128xf32>
    %14 = arith.extf %7 : vector<64x128xbf16> to vector<64x128xf32>
    %15 = tpu.reciprocal %13 {approx = true} : vector<64x128xf32> -> vector<64x128xf32>
    %16 = arith.mulf %14, %15 : vector<64x128xf32>
    %17 = arith.truncf %16 : vector<64x128xf32> to vector<64x128xbf16>
    %c0_7 = arith.constant 0 : index
    %c0_8 = arith.constant 0 : index
    %18 = vector.load %arg4[%c0_7, %c0_8] : memref<128x128xbf16, #tpu.memory_space<vmem>>, vector<128x128xbf16>
    %cst_9 = arith.constant dense<0.000000e+00> : vector<64x128xf32>
    %19 = tpu.matmul %17, %18, %cst_9 {dimension_numbers = #tpu.dot_dimension_numbers<[1], [0], [0], [1], [0, 0, 1, 1], [], []>} : vector<64x128xbf16>, vector<128x128xbf16>, vector<64x128xf32> -> vector<64x128xf32>
    %c0_10 = arith.constant 0 : index
    %c0_11 = arith.constant 0 : index
    %20 = vector.load %arg5[%c0_10, %c0_11] : memref<1x128xf32, #tpu.memory_space<vmem>>, vector<1x128xf32>
    %21 = vector.broadcast %20 : vector<1x128xf32> to vector<64x128xf32>
    %22 = arith.addf %19, %21 : vector<64x128xf32>
    %23 = arith.truncf %22 : vector<64x128xf32> to vector<64x128xbf16>
    %cst_12 = arith.constant 0.000000e+00 : bf16
    %24 = vector.broadcast %cst_12 : bf16 to vector<64x128xbf16>
    %25 = arith.subf %24, %23 : vector<64x128xbf16>
    %26 = math.exp %25 : vector<64x128xbf16>
    %cst_13 = arith.constant 1.000000e+00 : bf16
    %27 = vector.broadcast %cst_13 : bf16 to vector<64x128xbf16>
    %28 = arith.addf %27, %26 : vector<64x128xbf16>
    %29 = arith.extf %28 : vector<64x128xbf16> to vector<64x128xf32>
    %30 = arith.extf %23 : vector<64x128xbf16> to vector<64x128xf32>
    %31 = tpu.reciprocal %29 {approx = true} : vector<64x128xf32> -> vector<64x128xf32>
    %32 = arith.mulf %30, %31 : vector<64x128xf32>
    %33 = arith.truncf %32 : vector<64x128xf32> to vector<64x128xbf16>
    %c0_14 = arith.constant 0 : index
    %c0_15 = arith.constant 0 : index
    %34 = vector.load %arg6[%c0_14, %c0_15] : memref<64x128xbf16, #tpu.memory_space<vmem>>, vector<64x128xbf16>
    tpu.vector_store %arg6[%c0_14, %c0_15], %33 {strides = array<i32>} : memref<64x128xbf16, #tpu.memory_space<vmem>>, vector<64x128xbf16>,
    return
  }
  func.func @transform_0(%arg0: i32) -> (i32, i32) {
    %c0_i32 = arith.constant 0 : i32
    %c0_i32_0 = arith.constant 0 : i32
    return %arg0, %c0_i32 : i32, i32
  }
  func.func @transform_1(%arg0: i32) -> (i32, i32) {
    %c0_i32 = arith.constant 0 : i32
    %c0_i32_0 = arith.constant 0 : i32
    %c0_i32_1 = arith.constant 0 : i32
    return %c0_i32, %c0_i32_0 : i32, i32
  }
  func.func @transform_2(%arg0: i32) -> (i32, i32) {
    %c0_i32 = arith.constant 0 : i32
    %c0_i32_0 = arith.constant 0 : i32
    %c0_i32_1 = arith.constant 0 : i32
    return %c0_i32, %c0_i32_0 : i32, i32
  }
  func.func @transform_3(%arg0: i32) -> (i32, i32) {
    %c0_i32 = arith.constant 0 : i32
    %c0_i32_0 = arith.constant 0 : i32
    %c0_i32_1 = arith.constant 0 : i32
    return %c0_i32, %c0_i32_0 : i32, i32
  }
  func.func @transform_4(%arg0: i32) -> (i32, i32) {
    %c0_i32 = arith.constant 0 : i32
    %c0_i32_0 = arith.constant 0 : i32
    %c0_i32_1 = arith.constant 0 : i32
    return %c0_i32, %c0_i32_0 : i32, i32
  }
  func.func @transform_5(%arg0: i32) -> (i32, i32) {
    %c0_i32 = arith.constant 0 : i32
    %c0_i32_0 = arith.constant 0 : i32
    return %arg0, %c0_i32 : i32, i32
  }
}

</mosaic_0001>

<llo_original>
// kernel: tpu_custom_call.1
$region0: #{tpu_custom_call.1}
  #allocation0 [shape = 'u32[]', space=smem, size = 0x4, offset = 0x4, fixed_abs, tag = 'smem constant byte address 0x4 - core index']
  #allocation1 [shape = 'u32[144,128]{1,0:T(1,128)}', space=vmem, size = 0x12000, scoped, tag = 'internal scratch']
  %s0 = inlined_call_operand.vmem [shape: f32[128,32], index: 0, kind: input, shape index: {}]
  %s1 = inlined_call_operand.vmem [shape: bf16[32,128], index: 1, kind: input, shape index: {}]
  %s2 = inlined_call_operand.vmem [shape: f32[1,128], index: 2, kind: input, shape index: {}]
  %s3 = inlined_call_operand.vmem [shape: bf16[128,128], index: 3, kind: input, shape index: {}]
  %s4 = inlined_call_operand.vmem [shape: f32[1,128], index: 4, kind: input, shape index: {}]
  %s5 = inlined_call_operand.hbm [shape: bf16[128,128], index: 5, kind: output, shape index: {}]
  %s6 = sld [smem:[#allocation0]]
  $region53: #{tpu_custom_call.1} parent=0
    _
  %s8 = ssub.s32 1, %s6
  %s9 = scalar_select 0, %s8, %s6
  $region1: #{tpu_custom_call.1} parent=0
    #allocation2 [shape = 'u8[32768]{0}', space=vmem, size = 0x8000, scoped, tag = 'output window, operand 0']
    #allocation3 [shape = 's32[2]{0}', space=sflag, size = 0x8, scoped, tag = 'scoped memory for tpu_custom_call.1']
    %10 = vsyncpa [#allocation3], 0
    %s11 = scalar_lea.sflag [#allocation3], 1
    %12 = vsyncpa %s11, 0
    loop: start=0, step=1, limit=4
    $region2: #{tpu_custom_call.1} parent=1 // loop_pre_header
      _
    $region3: #{tpu_custom_call.1} parent=1 // loop_header
      %s14 = sphi 0, %s18
      %p15 = scmp.ge.s32.totalorder %s14, 4
      %s24 = sphi 0, %s26
      %s27 = sphi 0, %s24
      %s28 = sphi 0, %s27
      %s44 = sphi 0, %s28
      %s48 = sphi 0, %s48
      %s50 = sphi 0, %s48
      %s51 = sphi 0, %s50
      %s65 = sphi 0, %s51
      %s69 = sphi 0, %s69
      %s71 = sphi 0, %s69
      %s72 = sphi 0, %s71
      %s86 = sphi 0, %s72
      %s90 = sphi 0, %s90
      %s92 = sphi 0, %s90
      %s93 = sphi 0, %s92
      %s107 = sphi 0, %s93
      %s111 = sphi 0, %s111
      %s113 = sphi 0, %s111
      %s114 = sphi 0, %s113
      %s128 = sphi 0, %s114
      %s134 = sphi 0, %s136
      %s137 = sphi 0, %s134
      %s138 = sphi 0, %s137
      %s154 = sphi 0, %s138
    $region4: #{tpu_custom_call.1} parent=1 // loop_header_branch
      %17 = sbr.rel (%p15) target = $region8
    $region5: #{tpu_custom_call.1} parent=1 // loop_body
      %s19 = ssub.s32 %s14, 1
      %s20 = ssub.s32 %s14, 2
      %s21 = sadd.s32 %s14, 1
      %s22 = ssub.s32 %s14, %s21
      %p23 = scmp.eq.s32.totalorder %s22, 0
      %s25 = sadd.s32 %s24, 1
      %s26 = scalar_select %p23, %s24, %s25
      %p29 = pneg %p23
      %p30 = scmp.eq.s32.totalorder %s14, 1
      %p31 = por %p29, %p30
      %p32 = scmp.ne.s32.totalorder %s24, %s27
      %p33 = scmp.eq.s32.totalorder %s14, 0
      %p34 = por %p32, %p33
      %p35 = scmp.ne.s32.totalorder %s24, %s27
      %p36 = scmp.eq.s32.totalorder %s19, 1
      %p37 = por %p35, %p36
      %p38 = scmp.ne.s32.totalorder %s27, %s28
      %p39 = scmp.eq.s32.totalorder %s19, 0
      %p40 = por %p38, %p39
      %p41 = scmp.ne.s32.totalorder %s27, %s28
      %p42 = scmp.eq.s32.totalorder %s20, 1
      %p43 = por %p41, %p42
      %p45 = scmp.ne.s32.totalorder %s28, %s44
      %p46 = scmp.eq.s32.totalorder %s20, 0
      %p47 = por %p45, %p46
      %s49 = sadd.s32 %s48, 1
      %p52 = scmp.eq.s32.totalorder %s14, 1
      %p53 = scmp.ne.s32.totalorder %s48, %s50
      %p54 = scmp.eq.s32.totalorder %s14, 0
      %p55 = por %p53, %p54
      %p56 = scmp.ne.s32.totalorder %s48, %s50
      %p57 = scmp.eq.s32.totalorder %s19, 1
      %p58 = por %p56, %p57
      %p59 = scmp.ne.s32.totalorder %s50, %s51
      %p60 = scmp.eq.s32.totalorder %s19, 0
      %p61 = por %p59, %p60
      %p62 = scmp.ne.s32.totalorder %s50, %s51
      %p63 = scmp.eq.s32.totalorder %s20, 1
      %p64 = por %p62, %p63
      %p66 = scmp.ne.s32.totalorder %s51, %s65
      %p67 = scmp.eq.s32.totalorder %s20, 0
      %p68 = por %p66, %p67
      %s70 = sadd.s32 %s69, 1
      %p73 = scmp.eq.s32.totalorder %s14, 1
      %p74 = scmp.ne.s32.totalorder %s69, %s71
      %p75 = scmp.eq.s32.totalorder %s14, 0
      %p76 = por %p74, %p75
      %p77 = scmp.ne.s32.totalorder %s69, %s71
      %p78 = scmp.eq.s32.totalorder %s19, 1
      %p79 = por %p77, %p78
      %p80 = scmp.ne.s32.totalorder %s71, %s72
      %p81 = scmp.eq.s32.totalorder %s19, 0
      %p82 = por %p80, %p81
      %p83 = scmp.ne.s32.totalorder %s71, %s72
      %p84 = scmp.eq.s32.totalorder %s20, 1
      %p85 = por %p83, %p84
      %p87 = scmp.ne.s32.totalorder %s72, %s86
      %p88 = scmp.eq.s32.totalorder %s20, 0
      %p89 = por %p87, %p88
      %s91 = sadd.s32 %s90, 1
      %p94 = scmp.eq.s32.totalorder %s14, 1
      %p95 = scmp.ne.s32.totalorder %s90, %s92
      %p96 = scmp.eq.s32.totalorder %s14, 0
      %p97 = por %p95, %p96
      %p98 = scmp.ne.s32.totalorder %s90, %s92
      %p99 = scmp.eq.s32.totalorder %s19, 1
      %p100 = por %p98, %p99
      %p101 = scmp.ne.s32.totalorder %s92, %s93
      %p102 = scmp.eq.s32.totalorder %s19, 0
      %p103 = por %p101, %p102
      %p104 = scmp.ne.s32.totalorder %s92, %s93
      %p105 = scmp.eq.s32.totalorder %s20, 1
      %p106 = por %p104, %p105
      %p108 = scmp.ne.s32.totalorder %s93, %s107
      %p109 = scmp.eq.s32.totalorder %s20, 0
      %p110 = por %p108, %p109
      %s112 = sadd.s32 %s111, 1
      %p115 = scmp.eq.s32.totalorder %s14, 1
      %p116 = scmp.ne.s32.totalorder %s111, %s113
      %p117 = scmp.eq.s32.totalorder %s14, 0
      %p118 = por %p116, %p117
      %p119 = scmp.ne.s32.totalorder %s111, %s113
      %p120 = scmp.eq.s32.totalorder %s19, 1
      %p121 = por %p119, %p120
      %p122 = scmp.ne.s32.totalorder %s113, %s114
      %p123 = scmp.eq.s32.totalorder %s19, 0
      %p124 = por %p122, %p123
      %p125 = scmp.ne.s32.totalorder %s113, %s114
      %p126 = scmp.eq.s32.totalorder %s20, 1
      %p127 = por %p125, %p126
      %p129 = scmp.ne.s32.totalorder %s114, %s128
      %p130 = scmp.eq.s32.totalorder %s20, 0
      %p131 = por %p129, %p130
      %s132 = ssub.s32 %s14, %s21
      %p133 = scmp.eq.s32.totalorder %s132, 0
      %s135 = sadd.s32 %s134, 1
      %s136 = scalar_select %p133, %s134, %s135
      %p139 = pneg %p133
      %p140 = scmp.eq.s32.totalorder %s14, 1
      %p141 = por %p139, %p140
      %p142 = scmp.ne.s32.totalorder %s134, %s137
      %p143 = scmp.eq.s32.totalorder %s14, 0
      %p144 = por %p142, %p143
      %p145 = scmp.ne.s32.totalorder %s134, %s137
      %p146 = scmp.eq.s32.totalorder %s19, 1
      %p147 = por %p145, %p146
      %p148 = scmp.ne.s32.totalorder %s137, %s138
      %p149 = scmp.eq.s32.totalorder %s19, 0
      %p150 = por %p148, %p149
      %p151 = scmp.ne.s32.totalorder %s137, %s138
      %p152 = scmp.eq.s32.totalorder %s20, 1
      %p153 = por %p151, %p152
      %p155 = scmp.ne.s32.totalorder %s138, %s154
      %p156 = scmp.eq.s32.totalorder %s20, 0
      %p157 = por %p155, %p156
      %p158 = scmp.le.s32.totalorder 1, %s14
      %p159 = scmp.lt.s32.totalorder %s14, 3
      %p160 = pnand %p158, %p159
      %p161 = pneg %p160
      // Predicated region
      $region9: #{tpu_custom_call.1} parent=5 // pred_check
        _
      $region10: #{tpu_custom_call.1} parent=5 // pred_check_branch
        %163 = sbr.rel (%p160) target = $region12
      $region11: #{tpu_custom_call.1} parent=5 // pred_region
        %s164 = ssub.s32 %s14, 1
        // Predicated region
        $region13: #{tpu_custom_call.1} parent=11 // pred_check
          %p165 = pneg %p61
        $region14: #{tpu_custom_call.1} parent=11 // pred_check_branch
          %167 = sbr.rel (%p165) target = $region16
        $region15: #{tpu_custom_call.1} parent=11 // pred_region
          _
        $region16: #{tpu_custom_call.1} parent=11 // pred_fallthru
          _
        // Predicated region
        $region17: #{tpu_custom_call.1} parent=11 // pred_check
          %p168 = pneg %p82
        $region18: #{tpu_custom_call.1} parent=11 // pred_check_branch
          %170 = sbr.rel (%p168) target = $region20
        $region19: #{tpu_custom_call.1} parent=11 // pred_region
          _
        $region20: #{tpu_custom_call.1} parent=11 // pred_fallthru
          _
        // Predicated region
        $region21: #{tpu_custom_call.1} parent=11 // pred_check
          %p171 = pneg %p103
        $region22: #{tpu_custom_call.1} parent=11 // pred_check_branch
          %173 = sbr.rel (%p171) target = $region24
        $region23: #{tpu_custom_call.1} parent=11 // pred_region
          _
        $region24: #{tpu_custom_call.1} parent=11 // pred_fallthru
          _
        // Predicated region
        $region25: #{tpu_custom_call.1} parent=11 // pred_check
          %p174 = pneg %p124
        $region26: #{tpu_custom_call.1} parent=11 // pred_check_branch
          %176 = sbr.rel (%p174) target = $region28
        $region27: #{tpu_custom_call.1} parent=11 // pred_region
          _
        $region28: #{tpu_custom_call.1} parent=11 // pred_fallthru
          _
      $region12: #{tpu_custom_call.1} parent=5 // pred_fallthru
        _
      %p177 = scmp.lt.s32.totalorder %s14, 2
      // Predicated region
      $region29: #{tpu_custom_call.1} parent=5 // pred_check
        %p178 = pneg %p177
      $region30: #{tpu_custom_call.1} parent=5 // pred_check_branch
        %180 = sbr.rel (%p178) target = $region32
      $region31: #{tpu_custom_call.1} parent=5 // pred_region
        // Predicated region
        $region33: #{tpu_custom_call.1} parent=31 // pred_check
          %p181 = pneg %p34
        $region34: #{tpu_custom_call.1} parent=31 // pred_check_branch
          %183 = sbr.rel (%p181) target = $region36
        $region35: #{tpu_custom_call.1} parent=31 // pred_region
          %s184 = smul.u32 8, %s14
          %p185 = scmp.lt.s32.totalorder %s184, 15
          %s186 = scalar_select %p185, %s184, 15
          %s187 = smul.addr %s186, 8
          %s188 = scalar_lea.vmem %s0, %s187
          %s189 = smul.u32 8, %s14
        $region36: #{tpu_custom_call.1} parent=31 // pred_fallthru
          _
      $region32: #{tpu_custom_call.1} parent=5 // pred_fallthru
        _
      %p190 = scmp.le.s32.totalorder 1, %s14
      %p191 = scmp.lt.s32.totalorder %s14, 3
      %p192 = pnand %p190, %p191
      %p193 = pneg %p192
      // Predicated region
      $region37: #{tpu_custom_call.1} parent=5 // pred_check
        _
      $region38: #{tpu_custom_call.1} parent=5 // pred_check_branch
        %195 = sbr.rel (%p192) target = $region40
      $region39: #{tpu_custom_call.1} parent=5 // pred_region
        %s196 = ssub.s32 %s14, 1
        %s197 = smul.u32 8, %s19
        %p198 = scmp.lt.s32.totalorder %s197, 15
        %s199 = scalar_select %p198, %s197, 15
        %s200 = smul.addr %s199, 8
        %s201 = scalar_lea.vmem %s0, %s200
        %p202 = pneg %p40
        %p203 = pneg %p37
        %p204 = pneg %p61
        %p205 = pneg %p58
        %p206 = pneg %p82
        %p207 = pneg %p79
        %p208 = pneg %p103
        %p209 = pneg %p100
        %p210 = pneg %p124
        %p211 = pneg %p121
        %p212 = pneg %p150
        %p213 = pneg %p147
        %s214 = sand.u32 %s137, 1
        %s215 = scalar_lea.sflag [#allocation3], %s214
        %s216 = sand.u32 %s137, 1
        %s217 = smul.addr %s216, 32
        %s218 = scalar_lea.vmem [#allocation2], %s217
        %s219 = smul.u32 8, %s19
        %p220 = scmp.lt.s32.totalorder %s219, 15
        %s221 = scalar_select %p220, %s219, 15
        %s222 = smul.addr %s221, 8
        %s223 = scalar_lea.vmem %s0, %s222
        %s224 = smul.u32 8, %s19
        %s225 = smul.u32 8, %s19
        %v228 = vld [vmem:[%s223] sm:$0xff]
        %v229 = vld [vmem:[%s223 + $0x8] sm:$0xff]
        %v230 = vld [vmem:[%s223 + $0x10] sm:$0xff]
        %v231 = vld [vmem:[%s223 + $0x18] sm:$0xff]
        %v232 = vld [vmem:[%s223 + $0x20] sm:$0xff]
        %v233 = vld [vmem:[%s223 + $0x28] sm:$0xff]
        %v234 = vld [vmem:[%s223 + $0x30] sm:$0xff]
        %v235 = vld [vmem:[%s223 + $0x38] sm:$0xff]
        %v236 = vpack.c.bf16 %v229, %v228
        %v237 = vpack.c.bf16 %v231, %v230
        %v238 = vpack.c.bf16 %v233, %v232
        %v239 = vpack.c.bf16 %v235, %v234
        %v240 = vld [vmem:[%s1] sm:$0xf]
        %v241 = vld [vmem:[%s1 + $0x4] sm:$0xf]
        %v242 = vld [vmem:[%s1 + $0x8] sm:$0xf]
        %v243 = vld [vmem:[%s1 + $0xc] sm:$0xf]
        %v244 = vld [vmem:[%s2] sm:$0x1]
        %v246 = vlaneseq
        %v247 = vshrl.u32 %v246, 7
        %v248 = vsub.s32 0, %v247
        %v249 = vrot.slane %v244, %v248
        %v255 = vunpack.c.l.b16 %v240
        %v256 = vunpack.c.l.b16 %v241
        %v257 = vunpack.c.l.b16 %v242
        %v258 = vunpack.c.l.b16 %v243
        %v259 = vpack.c.b16 %v256, %v255
        %v260 = vpack.c.b16 %v258, %v257
        %vm263 = vcmask 261120
        %v265 = vsel %vm263, %v236, 0
        %v268 = vsel %vm263, %v237, 0
        %v271 = vsel %vm263, %v238, 0
        %v274 = vsel %vm263, %v239, 0
        %276 = vmatprep.subr.bf16.mxu0 0
        %277 = vmatpush1.bf16.msra.mxu0 0
        %278 = vmatprep.subr.bf16.mxu0 0
        %279 = vmatpush1.bf16.msra.mxu0 0
        %280 = vmatprep.subr.bf16.mxu0 0
        %281 = vmatpush1.bf16.msra.mxu0 0
        %282 = vmatprep.subr.bf16.mxu0 0
        %283 = vmatpush1.bf16.msra.mxu0 0
        %284 = vmatprep.subr.bf16.mxu0 0
        %285 = vmatpush1.bf16.msra.mxu0 0
        %286 = vmatprep.subr.bf16.mxu0 0
        %287 = vmatpush1.bf16.msra.mxu0 0
        %288 = vmatprep.subr.bf16.mxu0 0
        %289 = vmatpush1.bf16.msra.mxu0 %v260
        %290 = vmatprep.subr.bf16.mxu0 0
        %291 = vmatpush1.bf16.msra.mxu0 %v259
        %292 = vmatprep.subr.bf16.mxu0 0
        %293 = vmatpush2.bf16.msra.mxu0 0
        %294 = vmatprep.subr.bf16.mxu0 0
        %295 = vmatpush2.bf16.msra.mxu0 0
        %296 = vmatprep.subr.bf16.mxu0 0
        %297 = vmatpush2.bf16.msra.mxu0 0
        %298 = vmatprep.subr.bf16.mxu0 0
        %299 = vmatpush2.bf16.msra.mxu0 0
        %300 = vmatprep.subr.bf16.mxu0 0
        %301 = vmatpush2.bf16.msra.mxu0 0
        %302 = vmatprep.subr.bf16.mxu0 0
        %303 = vmatpush2.bf16.msra.mxu0 0
        %304 = vmatprep.subr.bf16.mxu0 0
        %305 = vmatpush2.bf16.msra.mxu0 0
        %306 = vmatprep.subr.bf16.mxu0 0
        %307 = vmatpush2.bf16.msra.mxu0 0
        %308 = vmatprep.mubr.bf16.mxu0 0
        %309 = vmatmul.mubr.bf16.gmra.mxu0 %v265
        %v310 = vpop.f32.mrf.mxu0
        %v311 = vadd.f32 %v249, %v310
        %v312 = vpop.f32.mrf.mxu0
        %v313 = vpop.f32.mrf.mxu0
        %v314 = vadd.f32 %v249, %v313
        %v315 = vpop.f32.mrf.mxu0
        %316 = vmatprep.mubr.bf16.mxu0 0
        %317 = vmatmul.mubr.bf16.gmra.mxu0 %v268
        %v318 = vpop.f32.mrf.mxu0
        %v319 = vadd.f32 %v249, %v318
        %v320 = vpop.f32.mrf.mxu0
        %v321 = vpop.f32.mrf.mxu0
        %v322 = vadd.f32 %v249, %v321
        %v323 = vpop.f32.mrf.mxu0
        %324 = vmatprep.mubr.bf16.mxu0 0
        %325 = vmatmul.mubr.bf16.gmra.mxu0 %v271
        %v326 = vpop.f32.mrf.mxu0
        %v327 = vadd.f32 %v249, %v326
        %v328 = vpop.f32.mrf.mxu0
        %v329 = vpop.f32.mrf.mxu0
        %v330 = vadd.f32 %v249, %v329
        %v331 = vpop.f32.mrf.mxu0
        %332 = vmatprep.mubr.bf16.mxu0 0
        %333 = vmatmul.mubr.bf16.gmra.mxu0 %v274
        %v334 = vpop.f32.mrf.mxu0
        %v335 = vadd.f32 %v249, %v334
        %v336 = vpop.f32.mrf.mxu0
        %v337 = vpop.f32.mrf.mxu0
        %v338 = vadd.f32 %v249, %v337
        %v339 = vpop.f32.mrf.mxu0
        %340 = vdwg.mxu0
        %v341 = vpack.c.bf16 %v314, %v311
        %v342 = vpack.c.bf16 %v322, %v319
        %v343 = vpack.c.bf16 %v330, %v327
        %v344 = vpack.c.bf16 %v338, %v335
        %v345 = vsub.bf16 0, %v341
        %v346 = vsub.bf16 0, %v342
        %v347 = vsub.bf16 0, %v343
        %v348 = vsub.bf16 0, %v344
        %v350 = vmul.bf16 %v345, 1069105081
        %v351 = vpow.bf16.pop %v350
        %v353 = vmul.bf16 %v346, 1069105081
        %v354 = vpow.bf16.pop %v353
        %v356 = vmul.bf16 %v347, 1069105081
        %v357 = vpow.bf16.pop %v356
        %v359 = vmul.bf16 %v348, 1069105081
        %v360 = vpow.bf16.pop %v359
        %v361 = vadd.bf16 %v351, 1065369472
        %v362 = vadd.bf16 %v354, 1065369472
        %v363 = vadd.bf16 %v357, 1065369472
        %v364 = vadd.bf16 %v360, 1065369472
        %v365 = vunpack.c.l.bf16 %v361
        %v366 = vunpack.c.h.bf16 %v361
        %v367 = vunpack.c.l.bf16 %v362
        %v368 = vunpack.c.h.bf16 %v362
        %v369 = vunpack.c.l.bf16 %v363
        %v370 = vunpack.c.h.bf16 %v363
        %v371 = vunpack.c.l.bf16 %v364
        %v372 = vunpack.c.h.bf16 %v364
        %v373 = vunpack.c.l.bf16 %v341
        %v374 = vunpack.c.h.bf16 %v341
        %v375 = vunpack.c.l.bf16 %v342
        %v376 = vunpack.c.h.bf16 %v342
        %v377 = vunpack.c.l.bf16 %v343
        %v378 = vunpack.c.h.bf16 %v343
        %v379 = vunpack.c.l.bf16 %v344
        %v380 = vunpack.c.h.bf16 %v344
        %v381 = vrcp.pop %v365
        %v382 = vrcp.pop %v366
        %v383 = vrcp.pop %v367
        %v384 = vrcp.pop %v368
        %v385 = vrcp.pop %v369
        %v386 = vrcp.pop %v370
        %v387 = vrcp.pop %v371
        %v388 = vrcp.pop %v372
        %v389 = vmul.f32 %v373, %v381
        %v390 = vmul.f32 %v374, %v382
        %v391 = vmul.f32 %v375, %v383
        %v392 = vmul.f32 %v376, %v384
        %v393 = vmul.f32 %v377, %v385
        %v394 = vmul.f32 %v378, %v386
        %v395 = vmul.f32 %v379, %v387
        %v396 = vmul.f32 %v380, %v388
        %v397 = vpack.c.bf16 %v390, %v389
        %v398 = vpack.c.bf16 %v392, %v391
        %v399 = vpack.c.bf16 %v394, %v393
        %v400 = vpack.c.bf16 %v396, %v395
        %v401 = vld [vmem:[%s3] sm:$0xf]
        %v402 = vld [vmem:[%s3 + $0x4] sm:$0xf]
        %v403 = vld [vmem:[%s3 + $0x8] sm:$0xf]
        %v404 = vld [vmem:[%s3 + $0xc] sm:$0xf]
        %v405 = vld [vmem:[%s3 + $0x10] sm:$0xf]
        %v406 = vld [vmem:[%s3 + $0x14] sm:$0xf]
        %v407 = vld [vmem:[%s3 + $0x18] sm:$0xf]
        %v408 = vld [vmem:[%s3 + $0x1c] sm:$0xf]
        %v409 = vld [vmem:[%s3 + $0x20] sm:$0xf]
        %v410 = vld [vmem:[%s3 + $0x24] sm:$0xf]
        %v411 = vld [vmem:[%s3 + $0x28] sm:$0xf]
        %v412 = vld [vmem:[%s3 + $0x2c] sm:$0xf]
        %v413 = vld [vmem:[%s3 + $0x30] sm:$0xf]
        %v414 = vld [vmem:[%s3 + $0x34] sm:$0xf]
        %v415 = vld [vmem:[%s3 + $0x38] sm:$0xf]
        %v416 = vld [vmem:[%s3 + $0x3c] sm:$0xf]
        %v417 = vld [vmem:[%s4] sm:$0x1]
        %v419 = vlaneseq
        %v420 = vshrl.u32 %v419, 7
        %v421 = vsub.s32 0, %v420
        %v422 = vrot.slane %v417, %v421
        %v440 = vunpack.c.l.b16 %v401
        %v441 = vunpack.c.l.b16 %v402
        %v442 = vunpack.c.l.b16 %v403
        %v443 = vunpack.c.l.b16 %v404
        %v444 = vunpack.c.l.b16 %v405
        %v445 = vunpack.c.l.b16 %v406
        %v446 = vunpack.c.l.b16 %v407
        %v447 = vunpack.c.l.b16 %v408
        %v448 = vunpack.c.l.b16 %v409
        %v449 = vunpack.c.l.b16 %v410
        %v450 = vunpack.c.l.b16 %v411
        %v451 = vunpack.c.l.b16 %v412
        %v452 = vunpack.c.l.b16 %v413
        %v453 = vunpack.c.l.b16 %v414
        %v454 = vunpack.c.l.b16 %v415
        %v455 = vunpack.c.l.b16 %v416
        %v456 = vpack.c.b16 %v441, %v440
        %v457 = vpack.c.b16 %v443, %v442
        %v458 = vpack.c.b16 %v445, %v444
        %v459 = vpack.c.b16 %v447, %v446
        %v460 = vpack.c.b16 %v449, %v448
        %v461 = vpack.c.b16 %v451, %v450
        %v462 = vpack.c.b16 %v453, %v452
        %v463 = vpack.c.b16 %v455, %v454
        %472 = vmatprep.subr.bf16.mxu0 0
        %473 = vmatpush1.bf16.msra.mxu0 %v463
        %474 = vmatprep.subr.bf16.mxu0 0
        %475 = vmatpush1.bf16.msra.mxu0 %v462
        %476 = vmatprep.subr.bf16.mxu0 0
        %477 = vmatpush1.bf16.msra.mxu0 %v461
        %478 = vmatprep.subr.bf16.mxu0 0
        %479 = vmatpush1.bf16.msra.mxu0 %v460
        %480 = vmatprep.subr.bf16.mxu0 0
        %481 = vmatpush1.bf16.msra.mxu0 %v459
        %482 = vmatprep.subr.bf16.mxu0 0
        %483 = vmatpush1.bf16.msra.mxu0 %v458
        %484 = vmatprep.subr.bf16.mxu0 0
        %485 = vmatpush1.bf16.msra.mxu0 %v457
        %486 = vmatprep.subr.bf16.mxu0 0
        %487 = vmatpush1.bf16.msra.mxu0 %v456
        %488 = vmatprep.subr.bf16.mxu0 0
        %489 = vmatpush2.bf16.msra.mxu0 0
        %490 = vmatprep.subr.bf16.mxu0 0
        %491 = vmatpush2.bf16.msra.mxu0 0
        %492 = vmatprep.subr.bf16.mxu0 0
        %493 = vmatpush2.bf16.msra.mxu0 0
        %494 = vmatprep.subr.bf16.mxu0 0
        %495 = vmatpush2.bf16.msra.mxu0 0
        %496 = vmatprep.subr.bf16.mxu0 0
        %497 = vmatpush2.bf16.msra.mxu0 0
        %498 = vmatprep.subr.bf16.mxu0 0
        %499 = vmatpush2.bf16.msra.mxu0 0
        %500 = vmatprep.subr.bf16.mxu0 0
        %501 = vmatpush2.bf16.msra.mxu0 0
        %502 = vmatprep.subr.bf16.mxu0 0
        %503 = vmatpush2.bf16.msra.mxu0 0
        %504 = vmatprep.mubr.bf16.mxu0 0
        %505 = vmatmul.mubr.bf16.gmra.mxu0 %v397
        %v506 = vpop.f32.mrf.mxu0
        %v507 = vadd.f32 %v422, %v506
        %v508 = vpop.f32.mrf.mxu0
        %v509 = vpop.f32.mrf.mxu0
        %v510 = vadd.f32 %v422, %v509
        %v511 = vpop.f32.mrf.mxu0
        %512 = vmatprep.mubr.bf16.mxu0 0
        %513 = vmatmul.mubr.bf16.gmra.mxu0 %v398
        %v514 = vpop.f32.mrf.mxu0
        %v515 = vadd.f32 %v422, %v514
        %v516 = vpop.f32.mrf.mxu0
        %v517 = vpop.f32.mrf.mxu0
        %v518 = vadd.f32 %v422, %v517
        %v519 = vpop.f32.mrf.mxu0
        %520 = vmatprep.mubr.bf16.mxu0 0
        %521 = vmatmul.mubr.bf16.gmra.mxu0 %v399
        %v522 = vpop.f32.mrf.mxu0
        %v523 = vadd.f32 %v422, %v522
        %v524 = vpop.f32.mrf.mxu0
        %v525 = vpop.f32.mrf.mxu0
        %v526 = vadd.f32 %v422, %v525
        %v527 = vpop.f32.mrf.mxu0
        %528 = vmatprep.mubr.bf16.mxu0 0
        %529 = vmatmul.mubr.bf16.gmra.mxu0 %v400
        %v530 = vpop.f32.mrf.mxu0
        %v531 = vadd.f32 %v422, %v530
        %v532 = vpop.f32.mrf.mxu0
        %v533 = vpop.f32.mrf.mxu0
        %v534 = vadd.f32 %v422, %v533
        %v535 = vpop.f32.mrf.mxu0
        %536 = vdwg.mxu0
        %v537 = vpack.c.bf16 %v510, %v507
        %v538 = vpack.c.bf16 %v518, %v515
        %v539 = vpack.c.bf16 %v526, %v523
        %v540 = vpack.c.bf16 %v534, %v531
        %v541 = vsub.bf16 0, %v537
        %v542 = vsub.bf16 0, %v538
        %v543 = vsub.bf16 0, %v539
        %v544 = vsub.bf16 0, %v540
        %v546 = vmul.bf16 %v541, 1069105081
        %v547 = vpow.bf16.pop %v546
        %v549 = vmul.bf16 %v542, 1069105081
        %v550 = vpow.bf16.pop %v549
        %v552 = vmul.bf16 %v543, 1069105081
        %v553 = vpow.bf16.pop %v552
        %v555 = vmul.bf16 %v544, 1069105081
        %v556 = vpow.bf16.pop %v555
        %v557 = vadd.bf16 %v547, 1065369472
        %v558 = vadd.bf16 %v550, 1065369472
        %v559 = vadd.bf16 %v553, 1065369472
        %v560 = vadd.bf16 %v556, 1065369472
        %v561 = vunpack.c.l.bf16 %v557
        %v562 = vunpack.c.h.bf16 %v557
        %v563 = vunpack.c.l.bf16 %v558
        %v564 = vunpack.c.h.bf16 %v558
        %v565 = vunpack.c.l.bf16 %v559
        %v566 = vunpack.c.h.bf16 %v559
        %v567 = vunpack.c.l.bf16 %v560
        %v568 = vunpack.c.h.bf16 %v560
        %v569 = vunpack.c.l.bf16 %v537
        %v570 = vunpack.c.h.bf16 %v537
        %v571 = vunpack.c.l.bf16 %v538
        %v572 = vunpack.c.h.bf16 %v538
        %v573 = vunpack.c.l.bf16 %v539
        %v574 = vunpack.c.h.bf16 %v539
        %v575 = vunpack.c.l.bf16 %v540
        %v576 = vunpack.c.h.bf16 %v540
        %v577 = vrcp.pop %v561
        %v578 = vrcp.pop %v562
        %v579 = vrcp.pop %v563
        %v580 = vrcp.pop %v564
        %v581 = vrcp.pop %v565
        %v582 = vrcp.pop %v566
        %v583 = vrcp.pop %v567
        %v584 = vrcp.pop %v568
        %v585 = vmul.f32 %v569, %v577
        %v586 = vmul.f32 %v570, %v578
        %v587 = vmul.f32 %v571, %v579
        %v588 = vmul.f32 %v572, %v580
        %v589 = vmul.f32 %v573, %v581
        %v590 = vmul.f32 %v574, %v582
        %v591 = vmul.f32 %v575, %v583
        %v592 = vmul.f32 %v576, %v584
        %v593 = vpack.c.bf16 %v586, %v585
        %v594 = vpack.c.bf16 %v588, %v587
        %v595 = vpack.c.bf16 %v590, %v589
        %v596 = vpack.c.bf16 %v592, %v591
        %v601 = vunpack.c.l.b16 %v593
        %v602 = vunpack.c.h.b16 %v593
        %v603 = vunpack.c.l.b16 %v594
        %v604 = vunpack.c.h.b16 %v594
        %v605 = vunpack.c.l.b16 %v595
        %v606 = vunpack.c.h.b16 %v595
        %v607 = vunpack.c.l.b16 %v596
        %v608 = vunpack.c.h.b16 %v596
        %v609 = vpack.c.b16 %v601, %v601
        %v610 = vpack.c.b16 %v602, %v602
        %v611 = vpack.c.b16 %v603, %v603
        %v612 = vpack.c.b16 %v604, %v604
        %v613 = vpack.c.b16 %v605, %v605
        %v614 = vpack.c.b16 %v606, %v606
        %v615 = vpack.c.b16 %v607, %v607
        %v616 = vpack.c.b16 %v608, %v608
        %625 = vst [vmem:[%s218] sm:$0xf] %v609
        %626 = vst [vmem:[%s218 + $0x4] sm:$0xf] %v610
        %627 = vst [vmem:[%s218 + $0x8] sm:$0xf] %v611
        %628 = vst [vmem:[%s218 + $0xc] sm:$0xf] %v612
        %629 = vst [vmem:[%s218 + $0x10] sm:$0xf] %v613
        %630 = vst [vmem:[%s218 + $0x14] sm:$0xf] %v614
        %631 = vst [vmem:[%s218 + $0x18] sm:$0xf] %v615
        %632 = vst [vmem:[%s218 + $0x1c] sm:$0xf] %v616
        %s633 = sand.u32 %s137, 1
        %s634 = scalar_lea.sflag [#allocation3], %s633
        %s635 = sand.u32 %s137, 1
        %s636 = smul.addr %s635, 32
        %s637 = scalar_lea.vmem [#allocation2], %s636
        // Predicated region
        $region41: #{tpu_custom_call.1} parent=39 // pred_check
          %p638 = pneg %p147
        $region42: #{tpu_custom_call.1} parent=39 // pred_check_branch
          %640 = sbr.rel (%p638) target = $region44
        $region43: #{tpu_custom_call.1} parent=39 // pred_region
          %s641 = smul.u32 8, %s19
          %s643 = ssub.s32 512, 512
          %644 = vsyncadd %s634, %s643
          %s645 = smul.addr %s641, 64
          %s646 = scalar_lea.hbm %s5, %s645
          %s647 = sshll.u32 %s637, 4
          %s648 = int_to_ptr.vmem [resolvable:$true] %s647
          %653 = dma.vmem_to_hbm [thread:$0]  %s648, 512, %s646, %s634, 64, 64, 4
        $region44: #{tpu_custom_call.1} parent=39 // pred_fallthru
          _
      $region40: #{tpu_custom_call.1} parent=5 // pred_fallthru
        _
      %p654 = scmp.le.s32.totalorder 2, %s14
      // Predicated region
      $region45: #{tpu_custom_call.1} parent=5 // pred_check
        %p655 = pneg %p654
      $region46: #{tpu_custom_call.1} parent=5 // pred_check_branch
        %657 = sbr.rel (%p655) target = $region48
      $region47: #{tpu_custom_call.1} parent=5 // pred_region
        %s658 = ssub.s32 %s14, 2
        // Predicated region
        $region49: #{tpu_custom_call.1} parent=47 // pred_check
          %p659 = pneg %p153
        $region50: #{tpu_custom_call.1} parent=47 // pred_check_branch
          %661 = sbr.rel (%p659) target = $region52
        $region51: #{tpu_custom_call.1} parent=47 // pred_region
          %s662 = sand.u32 %s138, 1
          %s663 = scalar_lea.sflag [#allocation3], %s662
          %s664 = sand.u32 %s138, 1
          %s665 = smul.addr %s664, 32
          %s666 = scalar_lea.vmem [#allocation2], %s665
          %667 = dma.done %s663, 512
        $region52: #{tpu_custom_call.1} parent=47 // pred_fallthru
          _
      $region48: #{tpu_custom_call.1} parent=5 // pred_fallthru
        _
    $region6: #{tpu_custom_call.1} parent=1 // loop_footer
      %s18 = sadd.s32 1, %s14
    $region7: #{tpu_custom_call.1} parent=1 // loop_footer_branch
      %13 = sbr.rel target = $region3
    $region8: #{tpu_custom_call.1} parent=1 // loop_exit
      _
    %668 = vsyncpa [#allocation3], 1
    %s669 = scalar_lea.sflag [#allocation3], 1
    %670 = vsyncpa %s669, 1

</llo_original>
